<compile_context>
chip_gen: v6e
topology: v6e:2x2x1
jax: 0.10.0
libtpu: 0.0.40
codegen_flags: <defaults>
</compile_context>

<pallas_src>
import functools
import math

import jax
import jax.numpy as jnp
from jax.experimental import pallas as pl
from jax.experimental.pallas import tpu as pltpu

LANE = 128
SUBLANE = 8
_TARGET_BUF_BYTES = 2 * 1024 * 1024  # per in-flight input buffer (v7x-safe)


def _iou_kernel(pred_ref, act_ref, out_ref, inter_ref, union_ref, *,
                threshold, smooth, n_feat, mask_cols):
    ni = pl.program_id(1)
    nn = pl.num_programs(1)

    @pl.when(ni == 0)
    def _():
        inter_ref[...] = jnp.zeros_like(inter_ref)
        union_ref[...] = jnp.zeros_like(union_ref)

    # Hard threshold in the input's native dtype (matches (x > t).float()).
    p = pred_ref[...] > threshold
    a = act_ref[...] > threshold

    if mask_cols:
        # Ragged feature tail: mask out-of-bounds columns of the last block
        # (their VMEM contents are unspecified) instead of padding in HBM.
        tb, tn = pred_ref.shape
        cols = ni * tn + jax.lax.broadcasted_iota(jnp.int32, (tb, tn), 1)
        valid = cols < n_feat
        p = p & valid
        a = a & valid

    # Per-sample (per-row) partial counts for this feature chunk.
    # NOTE: counts accumulate in f32; exact for < ~2^24 active elements/sample.
    inter_ref[...] += jnp.sum((p & a).astype(jnp.float32), axis=1,
                              keepdims=True)
    union_ref[...] += jnp.sum((p | a).astype(jnp.float32), axis=1,
                              keepdims=True)

    @pl.when(ni == nn - 1)
    def _():
        out_ref[...] = (inter_ref[...] + smooth) / (union_ref[...] + smooth)


def iou_score(predicted, actual, threshold: float = 0.5, smooth: float = 1e-6):
    """Pallas TPU implementation of IoUScore.forward. Returns a scalar f32."""
    assert predicted.shape == actual.shape, "inputs must have the same shape"
    B = predicted.shape[0]
    N = math.prod(predicted.shape[1:])

    # Reshape only (no copy, no upcast, no padding) — stream native dtype.
    pf = predicted.reshape(B, N)
    af = actual.reshape(B, N)
    itemsize = jnp.dtype(pf.dtype).itemsize

    n128 = pl.cdiv(N, LANE) * LANE

    # --- tile selection -----------------------------------------------------
    TB = B if B <= SUBLANE else SUBLANE
    max_tn = max(LANE, (_TARGET_BUF_BYTES // (TB * itemsize)) // LANE * LANE)
    if n128 <= max_tn:
        # Whole feature axis fits in one block: use the exact extent (allowed
        # because it equals the full array dim) -> no tail masking needed.
        TN = N
        if B > SUBLANE:
            # Small samples: fold more batch rows per step to amortize the
            # fixed per-grid-step overhead and keep DMAs reasonably sized.
            tb = _TARGET_BUF_BYTES // max(1, N * itemsize)
            tb = max(SUBLANE, (tb // SUBLANE) * SUBLANE)
            TB = min((B // SUBLANE) * SUBLANE, tb)
    else:
        # Feature axis is tiled: lane-aligned ~2 MiB chunks.
        TN = max_tn

    nb = pl.cdiv(B, TB)
    nn = pl.cdiv(N, TN)
    mask_cols = (N % TN) != 0

    kernel = functools.partial(
        _iou_kernel, threshold=threshold, smooth=smooth,
        n_feat=N, mask_cols=mask_cols)

    per_sample_iou = pl.pallas_call(
        kernel,
        out_shape=jax.ShapeDtypeStruct((B, 1), jnp.float32),
        grid_spec=pltpu.PrefetchScalarGridSpec(
            num_scalar_prefetch=0,
            grid=(nb, nn),
            in_specs=[
                pl.BlockSpec((TB, TN), lambda bi, ni: (bi, ni)),
                pl.BlockSpec((TB, TN), lambda bi, ni: (bi, ni)),
            ],
            out_specs=pl.BlockSpec((TB, 1), lambda bi, ni: (bi, 0)),
            scratch_shapes=[
                pltpu.VMEM((TB, 1), jnp.float32),  # per-sample intersection
                pltpu.VMEM((TB, 1), jnp.float32),  # per-sample union
            ],
        ),
        compiler_params=pltpu.CompilerParams(
            # Batch axis carries no cross-step state -> parallel (v7x 2 TCs);
            # feature axis is the reduction -> arbitrary.
            dimension_semantics=("parallel", "arbitrary"),
        ),
    )(pf, af)

    # Batch mean of B per-sample IoUs (tiny; done in the wrapper so the batch
    # grid axis stays parallel).
    return jnp.mean(per_sample_iou)


def _iou_ref(predicted, actual, threshold=0.5, smooth=1e-6):
    p = (predicted > threshold).astype(jnp.float32)
    a = (actual > threshold).astype(jnp.float32)
    inter = (p * a).sum(axis=(1, 2, 3))
    union = (p + a).sum(axis=(1, 2, 3)) - inter
    return ((inter + smooth) / (union + smooth)).mean()


if __name__ == "__main__":
    key = jax.random.PRNGKey(0)
    k1, k2 = jax.random.split(key)
    # Small segmentation-style (B, C, H, W) inputs.
    B, C, H, W = 2, 4, 16, 16
    predicted = jax.random.uniform(k1, (B, C, H, W), dtype=jnp.float32)
    actual = jax.random.uniform(k2, (B, C, H, W), dtype=jnp.float32)

    out = iou_score(predicted, actual)
    out = jax.block_until_ready(out)

    ref = _iou_ref(predicted, actual)
    assert jnp.allclose(out, ref, atol=1e-5, rtol=1e-5), (out, ref)

    print("KERNEL_OK")
</pallas_src>

<mosaic_0001>
module attributes {stable_mosaic.version = 11 : i64} {
  func.func @_iou_kernel(%arg0: i32, %arg1: i32, %arg2: memref<2x1024xf32, #tpu.memory_space<vmem>>, %arg3: memref<2x1024xf32, #tpu.memory_space<vmem>>, %arg4: memref<2x1xf32, #tpu.memory_space<vmem>>, %arg5: memref<2x1xf32, #tpu.memory_space<vmem>>, %arg6: memref<2x1xf32, #tpu.memory_space<vmem>>) attributes {dimension_semantics = [#tpu.dimension_semantics<parallel>, #tpu.dimension_semantics<arbitrary>], iteration_bounds = array<i64: 1, 1>, scalar_prefetch = 0 : i64, scratch_operands = 2 : i64, tpu.core_type = #tpu.core_type<tc>, window_params = [{transform_indices = @transform_0, window_bounds = array<i64: 2, 1024>}, {transform_indices = @transform_1, window_bounds = array<i64: 2, 1024>}, {transform_indices = @transform_2, window_bounds = array<i64: 2, 1>}]} {
    %c0_i32 = arith.constant 0 : i32
    %0 = arith.cmpi eq, %arg1, %c0_i32 : i32
    %1 = arith.extui %0 : i1 to i32
    %c0_i32_0 = arith.constant 0 : i32
    %2 = arith.cmpi ne, %1, %c0_i32_0 : i32
    scf.if %2 {
      %cst_17 = arith.constant 0.000000e+00 : f32
      %28 = vector.broadcast %cst_17 : f32 to vector<2x1xf32>
      %c0_18 = arith.constant 0 : index
      %c0_19 = arith.constant 0 : index
      %29 = vector.load %arg5[%c0_18, %c0_19] : memref<2x1xf32, #tpu.memory_space<vmem>>, vector<2x1xf32>
      tpu.vector_store %arg5[%c0_18, %c0_19], %28 {strides = array<i32>} : memref<2x1xf32, #tpu.memory_space<vmem>>, vector<2x1xf32>,
      %cst_20 = arith.constant 0.000000e+00 : f32
      %30 = vector.broadcast %cst_20 : f32 to vector<2x1xf32>
      %c0_21 = arith.constant 0 : index
      %c0_22 = arith.constant 0 : index
      %31 = vector.load %arg6[%c0_21, %c0_22] : memref<2x1xf32, #tpu.memory_space<vmem>>, vector<2x1xf32>
      tpu.vector_store %arg6[%c0_21, %c0_22], %30 {strides = array<i32>} : memref<2x1xf32, #tpu.memory_space<vmem>>, vector<2x1xf32>,
    } else {
    }
    %c0 = arith.constant 0 : index
    %c0_1 = arith.constant 0 : index
    %3 = vector.load %arg2[%c0, %c0_1] : memref<2x1024xf32, #tpu.memory_space<vmem>>, vector<2x1024xf32>
    %cst = arith.constant 5.000000e-01 : f32
    %4 = vector.broadcast %cst : f32 to vector<2x1024xf32>
    %5 = arith.cmpf ogt, %3, %4 : vector<2x1024xf32>
    %c0_2 = arith.constant 0 : index
    %c0_3 = arith.constant 0 : index
    %6 = vector.load %arg3[%c0_2, %c0_3] : memref<2x1024xf32, #tpu.memory_space<vmem>>, vector<2x1024xf32>
    %cst_4 = arith.constant 5.000000e-01 : f32
    %7 = vector.broadcast %cst_4 : f32 to vector<2x1024xf32>
    %8 = arith.cmpf ogt, %6, %7 : vector<2x1024xf32>
    %c0_5 = arith.constant 0 : index
    %c0_6 = arith.constant 0 : index
    %9 = vector.load %arg5[%c0_5, %c0_6] : memref<2x1xf32, #tpu.memory_space<vmem>>, vector<2x1xf32>
    %10 = arith.andi %5, %8 : vector<2x1024xi1>
    %11 = arith.extui %10 : vector<2x1024xi1> to vector<2x1024xi32>
    %12 = arith.sitofp %11 : vector<2x1024xi32> to vector<2x1024xf32>
    %cst_7 = arith.constant dense<0.000000e+00> : vector<2xf32>
    %13 = vector.multi_reduction <add>, %12, %cst_7 [1] : vector<2x1024xf32> to vector<2xf32>
    %14 = vector.shape_cast %13 : vector<2xf32> to vector<2x1xf32>
    %15 = arith.addf %9, %14 : vector<2x1xf32>
    %c0_8 = arith.constant 0 : index
    %c0_9 = arith.constant 0 : index
    %16 = vector.load %arg5[%c0_8, %c0_9] : memref<2x1xf32, #tpu.memory_space<vmem>>, vector<2x1xf32>
    tpu.vector_store %arg5[%c0_8, %c0_9], %15 {strides = array<i32>} : memref<2x1xf32, #tpu.memory_space<vmem>>, vector<2x1xf32>,
    %c0_10 = arith.constant 0 : index
    %c0_11 = arith.constant 0 : index
    %17 = vector.load %arg6[%c0_10, %c0_11] : memref<2x1xf32, #tpu.memory_space<vmem>>, vector<2x1xf32>
    %18 = arith.ori %5, %8 : vector<2x1024xi1>
    %19 = arith.extui %18 : vector<2x1024xi1> to vector<2x1024xi32>
    %20 = arith.sitofp %19 : vector<2x1024xi32> to vector<2x1024xf32>
    %cst_12 = arith.constant dense<0.000000e+00> : vector<2xf32>
    %21 = vector.multi_reduction <add>, %20, %cst_12 [1] : vector<2x1024xf32> to vector<2xf32>
    %22 = vector.shape_cast %21 : vector<2xf32> to vector<2x1xf32>
    %23 = arith.addf %17, %22 : vector<2x1xf32>
    %c0_13 = arith.constant 0 : index
    %c0_14 = arith.constant 0 : index
    %24 = vector.load %arg6[%c0_13, %c0_14] : memref<2x1xf32, #tpu.memory_space<vmem>>, vector<2x1xf32>
    tpu.vector_store %arg6[%c0_13, %c0_14], %23 {strides = array<i32>} : memref<2x1xf32, #tpu.memory_space<vmem>>, vector<2x1xf32>,
    %c0_i32_15 = arith.constant 0 : i32
    %25 = arith.cmpi eq, %arg1, %c0_i32_15 : i32
    %26 = arith.extui %25 : i1 to i32
    %c0_i32_16 = arith.constant 0 : i32
    %27 = arith.cmpi ne, %26, %c0_i32_16 : i32
    scf.if %27 {
      %c0_17 = arith.constant 0 : index
      %c0_18 = arith.constant 0 : index
      %28 = vector.load %arg5[%c0_17, %c0_18] : memref<2x1xf32, #tpu.memory_space<vmem>>, vector<2x1xf32>
      %cst_19 = arith.constant 9.99999997E-7 : f32
      %29 = vector.broadcast %cst_19 : f32 to vector<2x1xf32>
      %30 = arith.addf %28, %29 : vector<2x1xf32>
      %c0_20 = arith.constant 0 : index
      %c0_21 = arith.constant 0 : index
      %31 = vector.load %arg6[%c0_20, %c0_21] : memref<2x1xf32, #tpu.memory_space<vmem>>, vector<2x1xf32>
      %cst_22 = arith.constant 9.99999997E-7 : f32
      %32 = vector.broadcast %cst_22 : f32 to vector<2x1xf32>
      %33 = arith.addf %31, %32 : vector<2x1xf32>
      %34 = arith.divf %30, %33 : vector<2x1xf32>
      %c0_23 = arith.constant 0 : index
      %c0_24 = arith.constant 0 : index
      %35 = vector.load %arg4[%c0_23, %c0_24] : memref<2x1xf32, #tpu.memory_space<vmem>>, vector<2x1xf32>
      tpu.vector_store %arg4[%c0_23, %c0_24], %34 {strides = array<i32>} : memref<2x1xf32, #tpu.memory_space<vmem>>, vector<2x1xf32>,
    } else {
    }
    return
  }
  func.func @transform_0(%arg0: i32, %arg1: i32) -> (i32, i32) {
    %c0_i32 = arith.constant 0 : i32
    return %arg0, %arg1 : i32, i32
  }
  func.func @transform_1(%arg0: i32, %arg1: i32) -> (i32, i32) {
    %c0_i32 = arith.constant 0 : i32
    return %arg0, %arg1 : i32, i32
  }
  func.func @transform_2(%arg0: i32, %arg1: i32) -> (i32, i32) {
    %c0_i32 = arith.constant 0 : i32
    %c0_i32_0 = arith.constant 0 : i32
    return %arg0, %c0_i32 : i32, i32
  }
}

</mosaic_0001>

<llo_original>
// kernel: tpu_custom_call.1
$region0: #{tpu_custom_call.1}
  #allocation0 [shape = 'u32[]', space=smem, size = 0x4, offset = 0x4, fixed_abs, tag = 'smem constant byte address 0x4 - core index']
  #allocation1 [shape = 'u32[144,128]{1,0:T(1,128)}', space=vmem, size = 0x12000, scoped, tag = 'internal scratch']
  #allocation2 [shape = 'f32[2,1]{1,0:T(2,128)}', space=vmem, size = 0x400, scoped, tag = 'scratch operand']
  #allocation3 [shape = 'f32[2,1]{1,0:T(2,128)}', space=vmem, size = 0x400, scoped, tag = 'scratch operand']
  %s0 = inlined_call_operand.hbm [shape: f32[2,1024], index: 0, kind: input, shape index: {}]
  %s1 = inlined_call_operand.hbm [shape: f32[2,1024], index: 1, kind: input, shape index: {}]
  %s2 = inlined_call_operand.vmem [shape: f32[2,1], index: 2, kind: output, shape index: {}]
  %s3 = sld [smem:[#allocation0]]
  $region34: #{tpu_custom_call.1} parent=0
    _
  %s5 = ssub.s32 1, %s3
  %s6 = scalar_select 0, %s5, %s3
  $region1: #{tpu_custom_call.1} parent=0
    #allocation4 [shape = 'u8[8192]{0}', space=vmem, size = 0x2000, scoped, tag = 'input window, operand 0, single buffered']
    #allocation5 [shape = 's32[1]{0}', space=sflag, size = 0x4, scoped, tag = 'scoped memory for tpu_custom_call.1']
    #allocation6 [shape = 'u8[8192]{0}', space=vmem, size = 0x2000, scoped, tag = 'input window, operand 1, single buffered']
    #allocation7 [shape = 's32[1]{0}', space=sflag, size = 0x4, scoped, tag = 'scoped memory for tpu_custom_call.1']
    %7 = vsyncpa [#allocation5], 0
    %8 = vsyncpa [#allocation7], 0
    // Predicated region
    $region2: #{tpu_custom_call.1} parent=1 // pred_check
      _
    $region3: #{tpu_custom_call.1} parent=1 // pred_check_branch
      %10 = sbr.rel (0) target = $region5
    $region4: #{tpu_custom_call.1} parent=1 // pred_region
      %s12 = ssub.s32 256, 256
      %13 = vsyncadd [#allocation5], %s12
      %s15 = sshll.u32 [#allocation4], 4
      %s16 = int_to_ptr.vmem [resolvable:$true] %s15
      %18 = dma.hbm_to_vmem [thread:$0]  %s0, 256, %s16, [#allocation5]
    $region5: #{tpu_custom_call.1} parent=1 // pred_fallthru
      _
    // Predicated region
    $region6: #{tpu_custom_call.1} parent=1 // pred_check
      _
    $region7: #{tpu_custom_call.1} parent=1 // pred_check_branch
      %20 = sbr.rel (0) target = $region9
    $region8: #{tpu_custom_call.1} parent=1 // pred_region
      %s22 = ssub.s32 256, 256
      %23 = vsyncadd [#allocation7], %s22
      %s25 = sshll.u32 [#allocation6], 4
      %s26 = int_to_ptr.vmem [resolvable:$true] %s25
      %28 = dma.hbm_to_vmem [thread:$0]  %s1, 256, %s26, [#allocation7]
    $region9: #{tpu_custom_call.1} parent=1 // pred_fallthru
      _
    // Predicated region
    $region10: #{tpu_custom_call.1} parent=1 // pred_check
      _
    $region11: #{tpu_custom_call.1} parent=1 // pred_check_branch
      %30 = sbr.rel (0) target = $region13
    $region12: #{tpu_custom_call.1} parent=1 // pred_region
      %31 = dma.done [#allocation5], 256
    $region13: #{tpu_custom_call.1} parent=1 // pred_fallthru
      _
    // Predicated region
    $region14: #{tpu_custom_call.1} parent=1 // pred_check
      _
    $region15: #{tpu_custom_call.1} parent=1 // pred_check_branch
      %33 = sbr.rel (0) target = $region17
    $region16: #{tpu_custom_call.1} parent=1 // pred_region
      %34 = dma.done [#allocation7], 256
    $region17: #{tpu_custom_call.1} parent=1 // pred_fallthru
      _
    %p35 = scmp.eq.s32.totalorder 0, 0
    // Predicated region
    $region18: #{tpu_custom_call.1} parent=1 // pred_check
      %p36 = pneg %p35
    $region19: #{tpu_custom_call.1} parent=1 // pred_check_branch
      %38 = sbr.rel (%p36) target = $region21
    $region20: #{tpu_custom_call.1} parent=1 // pred_region
      %vm39 = vcmask 1024
      %40 = vst.msk [vmem:[#allocation2] sm:$0x3] %vm39, 0.0
      %41 = vst.msk [vmem:[#allocation3] sm:$0x3] %vm39, 0.0
    $region21: #{tpu_custom_call.1} parent=1 // pred_fallthru
      _
    %v42 = vld [vmem:[#allocation4] sm:$0xff]
    %v43 = vld [vmem:[#allocation4 + $0x8] sm:$0xff]
    %vm44 = vcmp.gt.f32.partialorder %v42, 0.5
    %vm45 = vcmp.gt.f32.partialorder %v43, 0.5
    %v46 = vld [vmem:[#allocation6] sm:$0xff]
    %v47 = vld [vmem:[#allocation6 + $0x8] sm:$0xff]
    %vm48 = vcmp.gt.f32.partialorder %v46, 0.5
    %vm49 = vcmp.gt.f32.partialorder %v47, 0.5
    %v50 = vld [vmem:[#allocation2] sm:$0x3]
    %vm51 = vmand %vm44, %vm48
    %vm52 = vmand %vm45, %vm49
    %v53 = vsel %vm51, 1, 0
    %v54 = vsel %vm52, 1, 0
    %v55 = vcvt.s32.f32 %v53
    %v56 = vcvt.s32.f32 %v54
    %v59 = vcombine.high %v55, %v55
    %v61 = vunpack.c.l.s4 1983009808
    %v62 = vunpack.c.0.s8 %v61
    %v63 = vlaneseq
    %v64 = vshrl.u32 %v63, 7
    %v65 = vsub.s32 %v62, %v64
    %v66 = vrot.slane %v55, %v65
    %v68 = vunpack.c.l.s4 1983009808
    %v69 = vunpack.c.0.s8 %v68
    %v70 = vlaneseq
    %v71 = vshrl.u32 %v70, 7
    %v72 = vsub.s32 %v69, %v71
    %v73 = vrot.slane %v59, %v72
    %v74 = vcombine.high %v66, %v66
    %v75 = vcombine.high %v73, %v73
    %v76 = vcombine.high %v56, %v56
    %v78 = vunpack.c.l.s4 1983009808
    %v79 = vunpack.c.0.s8 %v78
    %v80 = vlaneseq
    %v81 = vshrl.u32 %v80, 7
    %v82 = vsub.s32 %v79, %v81
    %v83 = vrot.slane %v56, %v82
    %v85 = vunpack.c.l.s4 1983009808
    %v86 = vunpack.c.0.s8 %v85
    %v87 = vlaneseq
    %v88 = vshrl.u32 %v87, 7
    %v89 = vsub.s32 %v86, %v88
    %v90 = vrot.slane %v76, %v89
    %v91 = vcombine.high %v83, %v83
    %v92 = vcombine.high %v90, %v90
    %vm101 = vcmask 1041408
    %v102 = vsel %vm101, %v66, 0.0
    %v103 = vsel %vm101, %v74, 0.0
    %v104 = vadd.f32 %v102, %v103
    %v105 = vsel %vm101, %v73, 0.0
    %v106 = vadd.f32 %v104, %v105
    %v107 = vsel %vm101, %v75, 0.0
    %v108 = vadd.f32 %v106, %v107
    %v109 = vsel %vm101, %v83, 0.0
    %v110 = vadd.f32 %v108, %v109
    %v111 = vsel %vm101, %v91, 0.0
    %v112 = vadd.f32 %v110, %v111
    %v113 = vsel %vm101, %v90, 0.0
    %v114 = vadd.f32 %v112, %v113
    %v115 = vsel %vm101, %v92, 0.0
    %v116 = vadd.f32 %v114, %v115
    %117 = vadd.xlane.f32.xlu0 %v116
    %v118 = vpop.xlane.xlu0 %117
    %v119 = vadd.f32 %v50, %v118
    %vm120 = vcmask 1024
    %121 = vst.msk [vmem:[#allocation2] sm:$0x3] %vm120, %v119
    %v122 = vld [vmem:[#allocation3] sm:$0x3]
    %vm123 = vmor %vm44, %vm48
    %vm124 = vmor %vm45, %vm49
    %v125 = vsel %vm123, 1, 0
    %v126 = vsel %vm124, 1, 0
    %v127 = vcvt.s32.f32 %v125
    %v128 = vcvt.s32.f32 %v126
    %v131 = vcombine.high %v127, %v127
    %v133 = vunpack.c.l.s4 1983009808
    %v134 = vunpack.c.0.s8 %v133
    %v135 = vlaneseq
    %v136 = vshrl.u32 %v135, 7
    %v137 = vsub.s32 %v134, %v136
    %v138 = vrot.slane %v127, %v137
    %v140 = vunpack.c.l.s4 1983009808
    %v141 = vunpack.c.0.s8 %v140
    %v142 = vlaneseq
    %v143 = vshrl.u32 %v142, 7
    %v144 = vsub.s32 %v141, %v143
    %v145 = vrot.slane %v131, %v144
    %v146 = vcombine.high %v138, %v138
    %v147 = vcombine.high %v145, %v145
    %v148 = vcombine.high %v128, %v128
    %v150 = vunpack.c.l.s4 1983009808
    %v151 = vunpack.c.0.s8 %v150
    %v152 = vlaneseq
    %v153 = vshrl.u32 %v152, 7
    %v154 = vsub.s32 %v151, %v153
    %v155 = vrot.slane %v128, %v154
    %v157 = vunpack.c.l.s4 1983009808
    %v158 = vunpack.c.0.s8 %v157
    %v159 = vlaneseq
    %v160 = vshrl.u32 %v159, 7
    %v161 = vsub.s32 %v158, %v160
    %v162 = vrot.slane %v148, %v161
    %v163 = vcombine.high %v155, %v155
    %v164 = vcombine.high %v162, %v162
    %v173 = vsel %vm101, %v138, 0.0
    %v174 = vsel %vm101, %v146, 0.0
    %v175 = vadd.f32 %v173, %v174
    %v176 = vsel %vm101, %v145, 0.0
    %v177 = vadd.f32 %v175, %v176
    %v178 = vsel %vm101, %v147, 0.0
    %v179 = vadd.f32 %v177, %v178
    %v180 = vsel %vm101, %v155, 0.0
    %v181 = vadd.f32 %v179, %v180
    %v182 = vsel %vm101, %v163, 0.0
    %v183 = vadd.f32 %v181, %v182
    %v184 = vsel %vm101, %v162, 0.0
    %v185 = vadd.f32 %v183, %v184
    %v186 = vsel %vm101, %v164, 0.0
    %v187 = vadd.f32 %v185, %v186
    %188 = vadd.xlane.f32.xlu0 %v187
    %v189 = vpop.xlane.xlu0 %188
    %v190 = vadd.f32 %v122, %v189
    %191 = vst.msk [vmem:[#allocation3] sm:$0x3] %vm120, %v190
    // Predicated region
    $region22: #{tpu_custom_call.1} parent=1 // pred_check
      %p192 = pneg %p35
    $region23: #{tpu_custom_call.1} parent=1 // pred_check_branch
      %194 = sbr.rel (%p192) target = $region25
    $region24: #{tpu_custom_call.1} parent=1 // pred_region
      %v195 = vld [vmem:[#allocation2] sm:$0x3]
      %v196 = vadd.f32 %v195, 1e-06
      %v197 = vld [vmem:[#allocation3] sm:$0x3]
      %v198 = vadd.f32 %v197, 1e-06
      %v199 = vrcp.pop %v198
      %v200 = vmul.f32 %v196, %v199
      %201 = vst.msk [vmem:[%s2] sm:$0x3] %vm120, %v200
    $region25: #{tpu_custom_call.1} parent=1 // pred_fallthru
      _
    // Predicated region
    $region26: #{tpu_custom_call.1} parent=1 // pred_check
      _
    $region27: #{tpu_custom_call.1} parent=1 // pred_check_branch
      %203 = sbr.rel (0) target = $region29
    $region28: #{tpu_custom_call.1} parent=1 // pred_region
      _
    $region29: #{tpu_custom_call.1} parent=1 // pred_fallthru
      _
    // Predicated region
    $region30: #{tpu_custom_call.1} parent=1 // pred_check
      _
    $region31: #{tpu_custom_call.1} parent=1 // pred_check_branch
      %205 = sbr.rel (0) target = $region33
    $region32: #{tpu_custom_call.1} parent=1 // pred_region
      _
    $region33: #{tpu_custom_call.1} parent=1 // pred_fallthru
      _
    %206 = vsyncpa [#allocation5], 1
    %207 = vsyncpa [#allocation7], 1

</llo_original>
